<compile_context>
chip_gen: v5e
topology: v5e:2x2
jax: 0.10.0
libtpu: 0.0.40
codegen_flags: <defaults>
</compile_context>

<pallas_src>
import jax
import jax.numpy as jnp
from jax.experimental import pallas as pl
from jax.experimental.pallas import tpu as pltpu

_LANES = 512            # lane-dense width (multiple of 128)
_MAX_TILE_ROWS = 1024   # 1024 * 512 * 4B = 2 MiB per f32 buffer (portable to v7x)


def _identity_kernel(dummy_ref, x_ref, o_ref):
    """o = (x + dummy) - dummy, computed elementwise on a lane-dense tile."""
    d = dummy_ref[0]                        # scalar parameter, resident in SMEM
    xv = x_ref[...].astype(o_ref.dtype)
    o_ref[...] = (xv + d) - d


@jax.jit
def module_i_forward(x, dummy):
    """Pallas equivalent of I.forward: x + dummy - dummy."""
    out_dtype = jnp.promote_types(x.dtype, dummy.dtype)
    orig_shape = x.shape
    n = x.size

    # ---- lane-dense repack: flatten -> (rows, _LANES) ----
    rows = -(-n // _LANES)

    # sublane alignment for the narrower dtype involved (f32:8, bf16:16, i8:32)
    itemsize = min(jnp.dtype(x.dtype).itemsize, jnp.dtype(out_dtype).itemsize)
    sub = max(8, 32 // itemsize)

    if rows >= sub:
        tile_rows = min(rows, _MAX_TILE_ROWS)
        tile_rows = (tile_rows // sub) * sub
        grid_rows = -(-rows // tile_rows)
    else:
        # tiny input: a single block equal to the full (padded) array is legal
        tile_rows = rows
        grid_rows = 1

    padded_rows = grid_rows * tile_rows
    padded_n = padded_rows * _LANES

    flat = x.reshape(-1)
    if padded_n != n:
        flat = jnp.pad(flat, (0, padded_n - n))
    x2d = flat.reshape(padded_rows, _LANES)

    out2d = pl.pallas_call(
        _identity_kernel,
        out_shape=jax.ShapeDtypeStruct((padded_rows, _LANES), out_dtype),
        grid_spec=pltpu.PrefetchScalarGridSpec(
            num_scalar_prefetch=0,
            grid=(grid_rows,),
            in_specs=[
                # grid-invariant scalar parameter: keep it in SMEM, no per-step DMA
                pl.BlockSpec(memory_space=pltpu.MemorySpace.SMEM),
                pl.BlockSpec((tile_rows, _LANES), lambda i: (i, 0)),
            ],
            out_specs=pl.BlockSpec((tile_rows, _LANES), lambda i: (i, 0)),
        ),
        compiler_params=pltpu.CompilerParams(
            dimension_semantics=("parallel",),
        ),
    )(dummy, x2d)

    out = out2d.reshape(-1)
    if padded_n != n:
        out = out[:n]
    return out.reshape(orig_shape)


if __name__ == "__main__":
    key = jax.random.PRNGKey(0)
    # small shapes consistent with the module's forward (any tensor works)
    x = jax.random.normal(key, (2, 4, 16, 32), dtype=jnp.float32)
    dummy = jnp.ones((1,), dtype=jnp.float32)   # nn.Parameter(torch.ones(1))

    out = module_i_forward(x, dummy)
    out = jax.block_until_ready(out)

    ref = (x + dummy[0]) - dummy[0]
    assert out.shape == x.shape, (out.shape, x.shape)
    assert out.dtype == ref.dtype, (out.dtype, ref.dtype)
    assert jnp.allclose(out, ref, atol=1e-6, rtol=0.0)

    print("KERNEL_OK")
</pallas_src>

<mosaic_0001>
module attributes {stable_mosaic.version = 11 : i64} {
  func.func @_identity_kernel(%arg0: i32, %arg1: memref<1xf32, #tpu.memory_space<smem>>, %arg2: memref<8x512xf32, #tpu.memory_space<vmem>>, %arg3: memref<8x512xf32, #tpu.memory_space<vmem>>) attributes {dimension_semantics = [#tpu.dimension_semantics<parallel>], iteration_bounds = array<i64: 1>, scalar_prefetch = 0 : i64, scratch_operands = 0 : i64, tpu.core_type = #tpu.core_type<tc>, window_params = [{transform_indices = @transform_0, window_bounds = array<i64: 1>}, {transform_indices = @transform_1, window_bounds = array<i64: 8, 512>}, {transform_indices = @transform_2, window_bounds = array<i64: 8, 512>}]} {
    %c0 = arith.constant 0 : index
    %0 = memref.load %arg1[%c0] : memref<1xf32, #tpu.memory_space<smem>>
    %c0_0 = arith.constant 0 : index
    %c0_1 = arith.constant 0 : index
    %1 = vector.load %arg2[%c0_0, %c0_1] : memref<8x512xf32, #tpu.memory_space<vmem>>, vector<8x512xf32>
    %2 = vector.broadcast %0 : f32 to vector<8x512xf32>
    %3 = arith.addf %1, %2 : vector<8x512xf32>
    %4 = vector.broadcast %0 : f32 to vector<8x512xf32>
    %5 = arith.subf %3, %4 : vector<8x512xf32>
    %c0_2 = arith.constant 0 : index
    %c0_3 = arith.constant 0 : index
    %6 = vector.load %arg3[%c0_2, %c0_3] : memref<8x512xf32, #tpu.memory_space<vmem>>, vector<8x512xf32>
    tpu.vector_store %arg3[%c0_2, %c0_3], %5 {strides = array<i32>} : memref<8x512xf32, #tpu.memory_space<vmem>>, vector<8x512xf32>,
    return
  }
  func.func @transform_0(%arg0: i32) -> i32 {
    %c0_i32 = arith.constant 0 : i32
    %c0_i32_0 = arith.constant 0 : i32
    return %c0_i32 : i32
  }
  func.func @transform_1(%arg0: i32) -> (i32, i32) {
    %c0_i32 = arith.constant 0 : i32
    %c0_i32_0 = arith.constant 0 : i32
    return %arg0, %c0_i32 : i32, i32
  }
  func.func @transform_2(%arg0: i32) -> (i32, i32) {
    %c0_i32 = arith.constant 0 : i32
    %c0_i32_0 = arith.constant 0 : i32
    return %arg0, %c0_i32 : i32, i32
  }
}

</mosaic_0001>

<llo_original>
// kernel: module_i_forward.1
$region0: #{module_i_forward.1}
  #allocation0 [shape = 'u32[]', space=smem, size = 0x4, offset = 0x4, fixed_abs, tag = 'smem constant byte address 0x4 - core index']
  #allocation1 [shape = 'u32[72,128]{1,0:T(1,128)}', space=vmem, size = 0x9000, scoped, tag = 'internal scratch']
  #allocation2 [shape = 'f32[1]{0:T(128)S(6)}', space=smem, size = 0x200, scoped, tag = 'scoped memory for module_i_forward.1']
  %s0 = inlined_call_operand.<no memory space> [shape: f32[1], index: 0, kind: input, shape index: {}]
  %s1 = inlined_call_operand.vmem [shape: f32[8,512], index: 1, kind: input, shape index: {}]
  %s2 = inlined_call_operand.vmem [shape: f32[8,512], index: 2, kind: output, shape index: {}]
  %s3 = sld [smem:[#allocation0]]
  $region18: #{module_i_forward.1} parent=0
    _
  %s5 = ssub.s32 1, %s3
  %s6 = scalar_select 0, %s5, %s3
  %7 = sst [smem:[#allocation2]] %s0
  // Predicated region
  $region2: #{module_i_forward.1} parent=0 // pred_check
    _
  $region3: #{module_i_forward.1} parent=0 // pred_check_branch
    %9 = sbr.rel (0) target = $region5
  $region4: #{module_i_forward.1} parent=0 // pred_region
    _
  $region5: #{module_i_forward.1} parent=0 // pred_fallthru
    _
  // Predicated region
  $region6: #{module_i_forward.1} parent=0 // pred_check
    _
  $region7: #{module_i_forward.1} parent=0 // pred_check_branch
    %11 = sbr.rel (0) target = $region9
  $region8: #{module_i_forward.1} parent=0 // pred_region
    _
  $region9: #{module_i_forward.1} parent=0 // pred_fallthru
    _
  %s12 = sld [smem:[#allocation2]]
  %v13 = vld [vmem:[%s1] sm:$0xff]
  %v14 = vld [vmem:[%s1 + $0x8] sm:$0xff]
  %v15 = vld [vmem:[%s1 + $0x10] sm:$0xff]
  %v16 = vld [vmem:[%s1 + $0x18] sm:$0xff]
  %v17 = vstv %s12
  %v18 = vadd.f32 %v13, %v17
  %v19 = vadd.f32 %v14, %v17
  %v20 = vadd.f32 %v15, %v17
  %v21 = vadd.f32 %v16, %v17
  %v22 = vsub.f32 %v18, %v17
  %v23 = vsub.f32 %v19, %v17
  %v24 = vsub.f32 %v20, %v17
  %v25 = vsub.f32 %v21, %v17
  %26 = vst [vmem:[%s2] sm:$0xff] %v22
  %27 = vst [vmem:[%s2 + $0x8] sm:$0xff] %v23
  %28 = vst [vmem:[%s2 + $0x10] sm:$0xff] %v24
  %29 = vst [vmem:[%s2 + $0x18] sm:$0xff] %v25
  // Predicated region
  $region10: #{module_i_forward.1} parent=0 // pred_check
    _
  $region11: #{module_i_forward.1} parent=0 // pred_check_branch
    %31 = sbr.rel (0) target = $region13
  $region12: #{module_i_forward.1} parent=0 // pred_region
    _
  $region13: #{module_i_forward.1} parent=0 // pred_fallthru
    _
  // Predicated region
  $region14: #{module_i_forward.1} parent=0 // pred_check
    _
  $region15: #{module_i_forward.1} parent=0 // pred_check_branch
    %33 = sbr.rel (0) target = $region17
  $region16: #{module_i_forward.1} parent=0 // pred_region
    _
  $region17: #{module_i_forward.1} parent=0 // pred_fallthru
    _

</llo_original>
